<compile_context>
chip_gen: v6e
topology: v6e:2x2x1
jax: 0.10.0
libtpu: 0.0.40
codegen_flags: <defaults>
</compile_context>

<pallas_src>
import functools
import math

import jax
import jax.numpy as jnp
from jax.experimental import pallas as pl
from jax.experimental.pallas import tpu as pltpu

NEG_SLOPE = 0.01                     # F.leaky_relu default negative_slope
MATMUL_DTYPE = jnp.float32           # jnp.bfloat16 on v6e/v7x if 1e-3 parity not needed
LANES = 128


def _round_up(x, m):
    return ((x + m - 1) // m) * m


# ----------------------------- Pallas kernel -------------------------------- #
def _critic_kernel(feat_ref, w0_ref, wpack_ref, bpack_ref, out_ref, *, nC, nA):
    """feat (TM,33) -> lane-dense (TM,128) slab [q | qb | zeros].

    wpack_ref is (5,128,128): [fc2, fused(bfc0|adv|val), bfc1, bfc2, fused(badv|bval)],
    each K/N zero-padded to 128.  bpack_ref is (6,128): row 0 holds the folded fc1 bias
    (constant hand-block contribution already added), rows 1..5 the remaining biases.
    """
    inv_nc = 1.0 / nC
    inv_na = 1.0 / nA

    def lrelu(x):
        return jnp.where(x > 0, x, NEG_SLOPE * x)

    def mm(x, w):
        return jnp.dot(x.astype(MATMUL_DTYPE), w.astype(MATMUL_DTYPE),
                       preferred_element_type=jnp.float32)

    biases = bpack_ref[...]                                       # (6, 128), resident

    # L0: fc1 restricted to the per-row features (hand block folded into bias row 0)
    x = lrelu(mm(feat_ref[...], w0_ref[...]) + biases[0:1, :])    # (TM, 128), cols 64:128 = 0
    # L1: fc2
    x = lrelu(mm(x, wpack_ref[0]) + biases[1:2, :])
    # L2: fused head  [bfc0 | adv | val]  (cols 0:64 | 64:64+nC | 64+nC)
    h1 = mm(x, wpack_ref[1]) + biases[2:3, :]
    a = h1[:, 64:64 + nC]
    v = h1[:, 64 + nC:64 + nC + 1]
    q = v + a - jnp.sum(a, axis=1, keepdims=True) * inv_nc

    # Betsize branch.  Applying lrelu to the full 128-wide slab is safe: every column
    # past the real bfc0 activations multiplies a zero weight row in wpack_ref[2].
    y = lrelu(h1)
    y = lrelu(mm(y, wpack_ref[2]) + biases[3:4, :])               # bfc1
    y = lrelu(mm(y, wpack_ref[3]) + biases[4:5, :])               # bfc2
    h2 = mm(y, wpack_ref[4]) + biases[5:6, :]                     # fused [badv | bval]
    ab = h2[:, 0:nA]
    vb = h2[:, nA:nA + 1]
    qb = vb + ab - jnp.sum(ab, axis=1, keepdims=True) * inv_na

    tile_m = q.shape[0]
    pad = jnp.zeros((tile_m, LANES - nC - nA), jnp.float32)
    out_ref[...] = jnp.concatenate([q, qb, pad], axis=1)          # lane-dense writeback


# --------------------------- parameter creation ------------------------------ #
def _linear_init(key, fan_in, fan_out):
    kw, kb = jax.random.split(key)
    bound = 1.0 / math.sqrt(fan_in)
    w = jax.random.uniform(kw, (fan_in, fan_out), jnp.float32, -bound, bound)
    b = jax.random.uniform(kb, (1, fan_out), jnp.float32, -bound, bound)
    return w, b


def init_params(seed, nC, nA, hidden_dims=(64, 64)):
    keys = jax.random.split(jax.random.PRNGKey(seed), 12)
    p = {}
    p['action_emb'] = jax.random.normal(keys[0], (6, 32), jnp.float32)     # nn.Embedding(6, 32)
    cb = 1.0 / math.sqrt(2 * 3)                                            # nn.Conv1d(2, 32, 3)
    p['conv_w'] = jax.random.uniform(keys[1], (32, 2, 3), jnp.float32, -cb, cb)
    p['conv_b'] = jax.random.uniform(keys[2], (32,), jnp.float32, -cb, cb)
    p['bn_gamma'] = jnp.ones((32,), jnp.float32)                           # nn.BatchNorm1d(32)
    p['bn_beta'] = jnp.zeros((32,), jnp.float32)
    p['bn_mean'] = jnp.zeros((32,), jnp.float32)
    p['bn_var'] = jnp.ones((32,), jnp.float32)
    p['fc1'] = _linear_init(keys[3], 97, hidden_dims[0])
    p['fc2'] = _linear_init(keys[4], hidden_dims[0], hidden_dims[1])
    p['adv'] = _linear_init(keys[5], 64, nC)
    p['val'] = _linear_init(keys[6], 64, 1)
    p['bfc0'] = _linear_init(keys[7], 64, hidden_dims[0])
    p['bfc1'] = _linear_init(keys[8], 64, hidden_dims[0])
    p['bfc2'] = _linear_init(keys[9], hidden_dims[0], hidden_dims[1])
    p['badv'] = _linear_init(keys[10], 64, nA)
    p['bval'] = _linear_init(keys[11], 64, 1)
    return p


# ---------------------- static weight fusion / packing ----------------------- #
def pack_weights(params, nC, nA):
    """Obs-independent fusion + zero-padding of the dense layers (done once)."""
    assert 64 + nC + 1 <= LANES and nA + 1 <= LANES and nC + nA <= LANES

    def pad_n(x):                                    # pad out_features -> 128
        return jnp.pad(x, ((0, 0), (0, LANES - x.shape[1])))

    def pad_kn(x):                                   # pad in & out features -> 128
        return jnp.pad(x, ((0, LANES - x.shape[0]), (0, LANES - x.shape[1])))

    w1, b1 = params['fc1']
    w2, b2 = params['fc2']
    wa, ba = params['adv']
    wv, bv = params['val']
    wb0, bb0 = params['bfc0']
    wb1, bb1 = params['bfc1']
    wb2, bb2 = params['bfc2']
    wab, bab = params['badv']
    wvb, bvb = params['bval']

    w0 = pad_n(w1[64:, :])                                       # fc1 rows for [a1 | betsize]
    wpack = jnp.stack([
        pad_kn(w2),                                              # fc2
        pad_kn(jnp.concatenate([wb0, wa, wv], axis=1)),          # fused [bfc0 | adv | val]
        pad_kn(wb1),                                             # bfc1
        pad_kn(wb2),                                             # bfc2
        pad_kn(jnp.concatenate([wab, wvb], axis=1)),             # fused [badv | bval]
    ])                                                           # (5, 128, 128)
    bpack_tail = jnp.concatenate([
        pad_n(b2),
        pad_n(jnp.concatenate([bb0, ba, bv], axis=1)),
        pad_n(bb1),
        pad_n(bb2),
        pad_n(jnp.concatenate([bab, bvb], axis=1)),
    ], axis=0)                                                   # (5, 128)
    return {'w1_hand': w1[:64, :], 'b1': b1, 'w0': w0,
            'wpack': wpack, 'bpack_tail': bpack_tail}


# ------------------------------ glue (plain JAX) ----------------------------- #
def _hand_block(params, obs, mapping):
    """Batch-invariant 64-wide conv/BN/ReLU block built from obs[0] (as in the module)."""
    hand = obs[0, mapping['rank']].astype(jnp.int32)
    vil = obs[0, mapping['vil_rank']].astype(jnp.int32)
    hot = jax.nn.one_hot(jnp.stack([hand, vil]), 4, dtype=jnp.float32)        # (2, 4)
    # Conv1d(2, 32, k=3) over a length-4 signal -> 2 positions, as patches @ weights.
    patches = jnp.stack([hot[:, 0:3].reshape(-1), hot[:, 1:4].reshape(-1)], axis=0)  # (2, 6)
    wflat = params['conv_w'].reshape(32, 6).T                                 # (6, 32)
    conv = patches @ wflat + params['conv_b']                                 # (2, 32)
    # TODO(synk): train-mode BatchNorm (per-batch statistics) not reproduced; eval-mode.
    bn = (conv - params['bn_mean']) * jax.lax.rsqrt(params['bn_var'] + 1e-5)
    bn = bn * params['bn_gamma'] + params['bn_beta']
    return jnp.maximum(bn, 0.0).T.reshape(1, -1)                              # (1, 64)


def _row_features(params, obs, mapping):
    """Per-row features: [action_embedding (32) | last_betsize (1)] -> (M, 33)."""
    act_idx = obs[:, mapping['previous_action']].astype(jnp.int32)
    a1 = params['action_emb'][act_idx]                                        # (M, 32)
    last_betsize = obs[:, mapping['previous_betsize']][:, None]               # (M, 1)
    return jnp.concatenate([a1, last_betsize], axis=1).astype(jnp.float32)


def flat_historical_critic_forward(params, packed, obs, mapping, nC, nA, tile_m_max=2048):
    M = obs.shape[0]

    # Fold the constant hand block through fc1: it becomes layer-0's bias, so the kernel
    # only has to stream 33 f32 per row instead of 97.
    h = _hand_block(params, obs, mapping)                                     # (1, 64)
    bias0 = h @ packed['w1_hand'] + packed['b1']                              # (1, 64)
    bias0 = jnp.pad(bias0, ((0, 0), (0, LANES - bias0.shape[1])))             # (1, 128)
    bpack = jnp.concatenate([bias0, packed['bpack_tail']], axis=0)            # (6, 128)

    feat = _row_features(params, obs, mapping)                                # (M, 33)
    tile_m = min(tile_m_max, _round_up(M, 8))
    m_pad = _round_up(M, tile_m)
    feat = jnp.pad(feat, ((0, m_pad - M), (0, 0)))

    kernel = functools.partial(_critic_kernel, nC=nC, nA=nA)
    out = pl.pallas_call(
        kernel,
        out_shape=jax.ShapeDtypeStruct((m_pad, LANES), jnp.float32),
        grid_spec=pltpu.PrefetchScalarGridSpec(
            num_scalar_prefetch=0,
            grid=(m_pad // tile_m,),
            in_specs=[
                pl.BlockSpec((tile_m, feat.shape[1]), lambda i: (i, 0)),      # streamed rows
                pl.BlockSpec((33, LANES), lambda i: (0, 0)),                  # resident fc1
                pl.BlockSpec((5, LANES, LANES), lambda i: (0, 0, 0)),         # resident weights
                pl.BlockSpec((6, LANES), lambda i: (0, 0)),                   # resident biases
            ],
            out_specs=pl.BlockSpec((tile_m, LANES), lambda i: (i, 0)),
        ),
        compiler_params=pltpu.CompilerParams(
            dimension_semantics=("parallel",),
            vmem_limit_bytes=48 * 1024 * 1024),
    )(feat, packed['w0'], packed['wpack'], bpack)

    return {'value': out[:M, 0:nC], 'betsize': out[:M, nC:nC + nA]}


# --------------------------- pure-JAX reference ------------------------------ #
def reference_forward(params, obs, mapping, nC, nA):
    M = obs.shape[0]
    h = _hand_block(params, obs, mapping)
    feat = jnp.concatenate([jnp.broadcast_to(h, (M, 64)),
                            _row_features(params, obs, mapping)], axis=1)     # (M, 97)

    def lrelu(x):
        return jnp.where(x > 0, x, NEG_SLOPE * x)

    def dense(x, wb):
        return x @ wb[0] + wb[1]

    x = lrelu(dense(feat, params['fc1']))
    x = lrelu(dense(x, params['fc2']))
    a = dense(x, params['adv'])
    v = dense(x, params['val'])
    q = v + a - jnp.mean(a, axis=1, keepdims=True)
    y = lrelu(dense(x, params['bfc0']))
    y = lrelu(dense(y, params['bfc1']))
    y = lrelu(dense(y, params['bfc2']))
    ab = dense(y, params['badv'])
    vb = dense(y, params['bval'])
    qb = vb + ab - jnp.mean(ab, axis=1, keepdims=True)
    return {'value': q, 'betsize': qb}


# ----------------------------------- main ------------------------------------ #
if __name__ == "__main__":
    seed = 0
    nS, nC, nA = 4, 5, 4
    hidden_dims = (64, 64)
    mapping = {'rank': 0, 'vil_rank': 1, 'previous_action': 2, 'previous_betsize': 3}
    M = 8                                        # batch of observations

    params = init_params(seed, nC, nA, hidden_dims)
    packed = pack_weights(params, nC, nA)

    key = jax.random.PRNGKey(0)
    k1, k2, k3, k4 = jax.random.split(key, 4)
    obs = jnp.stack([
        jax.random.randint(k1, (M,), 0, 4).astype(jnp.float32),   # rank        in [0, 4)
        jax.random.randint(k2, (M,), 0, 4).astype(jnp.float32),   # vil_rank    in [0, 4)
        jax.random.randint(k3, (M,), 0, 6).astype(jnp.float32),   # prev action in [0, 6)
        jax.random.uniform(k4, (M,), jnp.float32, 0.0, 2.0),      # prev betsize (float)
    ], axis=1)                                                    # (M, 4)

    out = flat_historical_critic_forward(params, packed, obs, mapping, nC, nA)
    jax.block_until_ready(out)

    ref = reference_forward(params, obs, mapping, nC, nA)
    assert out['value'].shape == (M, nC) and out['betsize'].shape == (M, nA)
    assert jnp.allclose(out['value'], ref['value'], atol=1e-3, rtol=1e-3)
    assert jnp.allclose(out['betsize'], ref['betsize'], atol=1e-3, rtol=1e-3)

    print("KERNEL_OK")
</pallas_src>

<mosaic_0001>
module attributes {stable_mosaic.version = 11 : i64} {
  func.func @_critic_kernel(%arg0: i32, %arg1: memref<8x33xf32, #tpu.memory_space<vmem>>, %arg2: memref<33x128xf32, #tpu.memory_space<vmem>>, %arg3: memref<5x128x128xf32, #tpu.memory_space<vmem>>, %arg4: memref<6x128xf32, #tpu.memory_space<vmem>>, %arg5: memref<8x128xf32, #tpu.memory_space<vmem>>) attributes {dimension_semantics = [#tpu.dimension_semantics<parallel>], iteration_bounds = array<i64: 1>, scalar_prefetch = 0 : i64, scratch_operands = 0 : i64, tpu.core_type = #tpu.core_type<tc>, window_params = [{transform_indices = @transform_0, window_bounds = array<i64: 8, 33>}, {pipeline_mode = #tpu.pipeline_mode<synchronous>, transform_indices = @transform_1, window_bounds = array<i64: 33, 128>}, {pipeline_mode = #tpu.pipeline_mode<synchronous>, transform_indices = @transform_2, window_bounds = array<i64: 5, 128, 128>}, {pipeline_mode = #tpu.pipeline_mode<synchronous>, transform_indices = @transform_3, window_bounds = array<i64: 6, 128>}, {transform_indices = @transform_4, window_bounds = array<i64: 8, 128>}]} {
    %c0 = arith.constant 0 : index
    %c0_0 = arith.constant 0 : index
    %0 = vector.load %arg4[%c0, %c0_0] : memref<6x128xf32, #tpu.memory_space<vmem>>, vector<6x128xf32>
    %c0_1 = arith.constant 0 : index
    %c0_2 = arith.constant 0 : index
    %1 = vector.load %arg1[%c0_1, %c0_2] : memref<8x33xf32, #tpu.memory_space<vmem>>, vector<8x33xf32>
    %c0_3 = arith.constant 0 : index
    %c0_4 = arith.constant 0 : index
    %2 = vector.load %arg2[%c0_3, %c0_4] : memref<33x128xf32, #tpu.memory_space<vmem>>, vector<33x128xf32>
    %cst = arith.constant dense<0.000000e+00> : vector<8x128xf32>
    %3 = tpu.matmul %1, %2, %cst {dimension_numbers = #tpu.dot_dimension_numbers<[1], [0], [0], [1], [0, 0, 1, 1], [], []>} : vector<8x33xf32>, vector<33x128xf32>, vector<8x128xf32> -> vector<8x128xf32>
    %4 = vector.extract_strided_slice %0 {offsets = [0, 0], sizes = [1, 128], strides = [1, 1]} : vector<6x128xf32> to vector<1x128xf32>
    %5 = vector.broadcast %4 : vector<1x128xf32> to vector<8x128xf32>
    %6 = arith.addf %3, %5 : vector<8x128xf32>
    %cst_5 = arith.constant 0.000000e+00 : f32
    %7 = vector.broadcast %cst_5 : f32 to vector<8x128xf32>
    %8 = arith.cmpf ogt, %6, %7 : vector<8x128xf32>
    %cst_6 = arith.constant 0.00999999977 : f32
    %9 = vector.broadcast %cst_6 : f32 to vector<8x128xf32>
    %10 = arith.mulf %9, %6 : vector<8x128xf32>
    %11 = arith.select %8, %6, %10 : vector<8x128xi1>, vector<8x128xf32>
    %c0_7 = arith.constant 0 : index
    %c0_8 = arith.constant 0 : index
    %c0_9 = arith.constant 0 : index
    %12 = vector.load %arg3[%c0_7, %c0_8, %c0_9] : memref<5x128x128xf32, #tpu.memory_space<vmem>>, vector<1x128x128xf32>
    %13 = vector.shape_cast %12 : vector<1x128x128xf32> to vector<128x128xf32>
    %cst_10 = arith.constant dense<0.000000e+00> : vector<8x128xf32>
    %14 = tpu.matmul %11, %13, %cst_10 {dimension_numbers = #tpu.dot_dimension_numbers<[1], [0], [0], [1], [0, 0, 1, 1], [], []>} : vector<8x128xf32>, vector<128x128xf32>, vector<8x128xf32> -> vector<8x128xf32>
    %15 = vector.extract_strided_slice %0 {offsets = [1, 0], sizes = [1, 128], strides = [1, 1]} : vector<6x128xf32> to vector<1x128xf32>
    %16 = vector.broadcast %15 : vector<1x128xf32> to vector<8x128xf32>
    %17 = arith.addf %14, %16 : vector<8x128xf32>
    %cst_11 = arith.constant 0.000000e+00 : f32
    %18 = vector.broadcast %cst_11 : f32 to vector<8x128xf32>
    %19 = arith.cmpf ogt, %17, %18 : vector<8x128xf32>
    %cst_12 = arith.constant 0.00999999977 : f32
    %20 = vector.broadcast %cst_12 : f32 to vector<8x128xf32>
    %21 = arith.mulf %20, %17 : vector<8x128xf32>
    %22 = arith.select %19, %17, %21 : vector<8x128xi1>, vector<8x128xf32>
    %c1 = arith.constant 1 : index
    %c0_13 = arith.constant 0 : index
    %c0_14 = arith.constant 0 : index
    %23 = vector.load %arg3[%c1, %c0_13, %c0_14] : memref<5x128x128xf32, #tpu.memory_space<vmem>>, vector<1x128x128xf32>
    %24 = vector.shape_cast %23 : vector<1x128x128xf32> to vector<128x128xf32>
    %cst_15 = arith.constant dense<0.000000e+00> : vector<8x128xf32>
    %25 = tpu.matmul %22, %24, %cst_15 {dimension_numbers = #tpu.dot_dimension_numbers<[1], [0], [0], [1], [0, 0, 1, 1], [], []>} : vector<8x128xf32>, vector<128x128xf32>, vector<8x128xf32> -> vector<8x128xf32>
    %26 = vector.extract_strided_slice %0 {offsets = [2, 0], sizes = [1, 128], strides = [1, 1]} : vector<6x128xf32> to vector<1x128xf32>
    %27 = vector.broadcast %26 : vector<1x128xf32> to vector<8x128xf32>
    %28 = arith.addf %25, %27 : vector<8x128xf32>
    %29 = vector.extract_strided_slice %28 {offsets = [0, 64], sizes = [8, 5], strides = [1, 1]} : vector<8x128xf32> to vector<8x5xf32>
    %30 = vector.extract_strided_slice %28 {offsets = [0, 69], sizes = [8, 1], strides = [1, 1]} : vector<8x128xf32> to vector<8x1xf32>
    %31 = vector.broadcast %30 : vector<8x1xf32> to vector<8x5xf32>
    %32 = arith.addf %31, %29 : vector<8x5xf32>
    %cst_16 = arith.constant dense<0.000000e+00> : vector<8xf32>
    %33 = vector.multi_reduction <add>, %29, %cst_16 [1] : vector<8x5xf32> to vector<8xf32>
    %34 = vector.shape_cast %33 : vector<8xf32> to vector<8x1xf32>
    %cst_17 = arith.constant 2.000000e-01 : f32
    %35 = vector.broadcast %cst_17 : f32 to vector<8x1xf32>
    %36 = arith.mulf %34, %35 : vector<8x1xf32>
    %37 = vector.broadcast %36 : vector<8x1xf32> to vector<8x5xf32>
    %38 = arith.subf %32, %37 : vector<8x5xf32>
    %cst_18 = arith.constant 0.000000e+00 : f32
    %39 = vector.broadcast %cst_18 : f32 to vector<8x128xf32>
    %40 = arith.cmpf ogt, %28, %39 : vector<8x128xf32>
    %cst_19 = arith.constant 0.00999999977 : f32
    %41 = vector.broadcast %cst_19 : f32 to vector<8x128xf32>
    %42 = arith.mulf %41, %28 : vector<8x128xf32>
    %43 = arith.select %40, %28, %42 : vector<8x128xi1>, vector<8x128xf32>
    %c2 = arith.constant 2 : index
    %c0_20 = arith.constant 0 : index
    %c0_21 = arith.constant 0 : index
    %44 = vector.load %arg3[%c2, %c0_20, %c0_21] : memref<5x128x128xf32, #tpu.memory_space<vmem>>, vector<1x128x128xf32>
    %45 = vector.shape_cast %44 : vector<1x128x128xf32> to vector<128x128xf32>
    %cst_22 = arith.constant dense<0.000000e+00> : vector<8x128xf32>
    %46 = tpu.matmul %43, %45, %cst_22 {dimension_numbers = #tpu.dot_dimension_numbers<[1], [0], [0], [1], [0, 0, 1, 1], [], []>} : vector<8x128xf32>, vector<128x128xf32>, vector<8x128xf32> -> vector<8x128xf32>
    %47 = vector.extract_strided_slice %0 {offsets = [3, 0], sizes = [1, 128], strides = [1, 1]} : vector<6x128xf32> to vector<1x128xf32>
    %48 = vector.broadcast %47 : vector<1x128xf32> to vector<8x128xf32>
    %49 = arith.addf %46, %48 : vector<8x128xf32>
    %cst_23 = arith.constant 0.000000e+00 : f32
    %50 = vector.broadcast %cst_23 : f32 to vector<8x128xf32>
    %51 = arith.cmpf ogt, %49, %50 : vector<8x128xf32>
    %cst_24 = arith.constant 0.00999999977 : f32
    %52 = vector.broadcast %cst_24 : f32 to vector<8x128xf32>
    %53 = arith.mulf %52, %49 : vector<8x128xf32>
    %54 = arith.select %51, %49, %53 : vector<8x128xi1>, vector<8x128xf32>
    %c3 = arith.constant 3 : index
    %c0_25 = arith.constant 0 : index
    %c0_26 = arith.constant 0 : index
    %55 = vector.load %arg3[%c3, %c0_25, %c0_26] : memref<5x128x128xf32, #tpu.memory_space<vmem>>, vector<1x128x128xf32>
    %56 = vector.shape_cast %55 : vector<1x128x128xf32> to vector<128x128xf32>
    %cst_27 = arith.constant dense<0.000000e+00> : vector<8x128xf32>
    %57 = tpu.matmul %54, %56, %cst_27 {dimension_numbers = #tpu.dot_dimension_numbers<[1], [0], [0], [1], [0, 0, 1, 1], [], []>} : vector<8x128xf32>, vector<128x128xf32>, vector<8x128xf32> -> vector<8x128xf32>
    %58 = vector.extract_strided_slice %0 {offsets = [4, 0], sizes = [1, 128], strides = [1, 1]} : vector<6x128xf32> to vector<1x128xf32>
    %59 = vector.broadcast %58 : vector<1x128xf32> to vector<8x128xf32>
    %60 = arith.addf %57, %59 : vector<8x128xf32>
    %cst_28 = arith.constant 0.000000e+00 : f32
    %61 = vector.broadcast %cst_28 : f32 to vector<8x128xf32>
    %62 = arith.cmpf ogt, %60, %61 : vector<8x128xf32>
    %cst_29 = arith.constant 0.00999999977 : f32
    %63 = vector.broadcast %cst_29 : f32 to vector<8x128xf32>
    %64 = arith.mulf %63, %60 : vector<8x128xf32>
    %65 = arith.select %62, %60, %64 : vector<8x128xi1>, vector<8x128xf32>
    %c4 = arith.constant 4 : index
    %c0_30 = arith.constant 0 : index
    %c0_31 = arith.constant 0 : index
    %66 = vector.load %arg3[%c4, %c0_30, %c0_31] : memref<5x128x128xf32, #tpu.memory_space<vmem>>, vector<1x128x128xf32>
    %67 = vector.shape_cast %66 : vector<1x128x128xf32> to vector<128x128xf32>
    %cst_32 = arith.constant dense<0.000000e+00> : vector<8x128xf32>
    %68 = tpu.matmul %65, %67, %cst_32 {dimension_numbers = #tpu.dot_dimension_numbers<[1], [0], [0], [1], [0, 0, 1, 1], [], []>} : vector<8x128xf32>, vector<128x128xf32>, vector<8x128xf32> -> vector<8x128xf32>
    %69 = vector.extract_strided_slice %0 {offsets = [5, 0], sizes = [1, 128], strides = [1, 1]} : vector<6x128xf32> to vector<1x128xf32>
    %70 = vector.broadcast %69 : vector<1x128xf32> to vector<8x128xf32>
    %71 = arith.addf %68, %70 : vector<8x128xf32>
    %72 = vector.extract_strided_slice %71 {offsets = [0, 0], sizes = [8, 4], strides = [1, 1]} : vector<8x128xf32> to vector<8x4xf32>
    %73 = vector.extract_strided_slice %71 {offsets = [0, 4], sizes = [8, 1], strides = [1, 1]} : vector<8x128xf32> to vector<8x1xf32>
    %74 = vector.broadcast %73 : vector<8x1xf32> to vector<8x4xf32>
    %75 = arith.addf %74, %72 : vector<8x4xf32>
    %cst_33 = arith.constant dense<0.000000e+00> : vector<8xf32>
    %76 = vector.multi_reduction <add>, %72, %cst_33 [1] : vector<8x4xf32> to vector<8xf32>
    %77 = vector.shape_cast %76 : vector<8xf32> to vector<8x1xf32>
    %cst_34 = arith.constant 2.500000e-01 : f32
    %78 = vector.broadcast %cst_34 : f32 to vector<8x1xf32>
    %79 = arith.mulf %77, %78 : vector<8x1xf32>
    %80 = vector.broadcast %79 : vector<8x1xf32> to vector<8x4xf32>
    %81 = arith.subf %75, %80 : vector<8x4xf32>
    %cst_35 = arith.constant 0.000000e+00 : f32
    %82 = vector.broadcast %cst_35 : f32 to vector<8x119xf32>
    %83 = tpu.concatenate %38, %81, %82 in 1 : vector<8x5xf32>, vector<8x4xf32>, vector<8x119xf32> -> vector<8x128xf32>
    %c0_36 = arith.constant 0 : index
    %c0_37 = arith.constant 0 : index
    %84 = vector.load %arg5[%c0_36, %c0_37] : memref<8x128xf32, #tpu.memory_space<vmem>>, vector<8x128xf32>
    tpu.vector_store %arg5[%c0_36, %c0_37], %83 {strides = array<i32>} : memref<8x128xf32, #tpu.memory_space<vmem>>, vector<8x128xf32>,
    return
  }
  func.func @transform_0(%arg0: i32) -> (i32, i32) {
    %c0_i32 = arith.constant 0 : i32
    %c0_i32_0 = arith.constant 0 : i32
    return %arg0, %c0_i32 : i32, i32
  }
  func.func @transform_1(%arg0: i32) -> (i32, i32) {
    %c0_i32 = arith.constant 0 : i32
    %c0_i32_0 = arith.constant 0 : i32
    %c0_i32_1 = arith.constant 0 : i32
    return %c0_i32, %c0_i32_0 : i32, i32
  }
  func.func @transform_2(%arg0: i32) -> (i32, i32, i32) {
    %c0_i32 = arith.constant 0 : i32
    %c0_i32_0 = arith.constant 0 : i32
    %c0_i32_1 = arith.constant 0 : i32
    %c0_i32_2 = arith.constant 0 : i32
    return %c0_i32, %c0_i32_0, %c0_i32_1 : i32, i32, i32
  }
  func.func @transform_3(%arg0: i32) -> (i32, i32) {
    %c0_i32 = arith.constant 0 : i32
    %c0_i32_0 = arith.constant 0 : i32
    %c0_i32_1 = arith.constant 0 : i32
    return %c0_i32, %c0_i32_0 : i32, i32
  }
  func.func @transform_4(%arg0: i32) -> (i32, i32) {
    %c0_i32 = arith.constant 0 : i32
    %c0_i32_0 = arith.constant 0 : i32
    return %arg0, %c0_i32 : i32, i32
  }
}

</mosaic_0001>

<llo_original>
// kernel: tpu_custom_call.1
$region0: #{tpu_custom_call.1}
  #allocation0 [shape = 'u32[]', space=smem, size = 0x4, offset = 0x4, fixed_abs, tag = 'smem constant byte address 0x4 - core index']
  #allocation1 [shape = 'u32[144,128]{1,0:T(1,128)}', space=vmem, size = 0x12000, scoped, tag = 'internal scratch']
  %s0 = inlined_call_operand.hbm [shape: f32[8,33], index: 0, kind: input, shape index: {}]
  %s1 = inlined_call_operand.hbm [shape: f32[33,128], index: 1, kind: input, shape index: {}]
  %s2 = inlined_call_operand.hbm [shape: f32[5,128,128], index: 2, kind: input, shape index: {}]
  %s3 = inlined_call_operand.hbm [shape: f32[6,128], index: 3, kind: input, shape index: {}]
  %s4 = inlined_call_operand.hbm [shape: f32[8,128], index: 4, kind: output, shape index: {}]
  %s5 = sld [smem:[#allocation0]]
  $region42: #{tpu_custom_call.1} parent=0
    _
  %s7 = ssub.s32 1, %s5
  %s8 = scalar_select 0, %s7, %s5
  $region1: #{tpu_custom_call.1} parent=0
    #allocation2 [shape = 'u8[4096]{0}', space=vmem, size = 0x1000, scoped, tag = 'input window, operand 0, single buffered']
    #allocation3 [shape = 's32[1]{0}', space=sflag, size = 0x4, scoped, tag = 'scoped memory for tpu_custom_call.1']
    #allocation4 [shape = 's32[1]{0}', space=sflag, size = 0x4, scoped, tag = 'scoped memory for tpu_custom_call.1']
    #allocation5 [shape = 'u8[20480]{0}', space=vmem, size = 0x5000, scoped, tag = 'input window, operand 1, single buffered']
    #allocation6 [shape = 's32[1]{0}', space=sflag, size = 0x4, scoped, tag = 'scoped memory for tpu_custom_call.1']
    #allocation7 [shape = 'u8[327680]{0}', space=vmem, size = 0x50000, scoped, tag = 'input window, operand 2, single buffered']
    #allocation8 [shape = 'u8[4096]{0}', space=vmem, size = 0x1000, scoped, tag = 'input window, operand 3, single buffered']
    #allocation9 [shape = 's32[1]{0}', space=sflag, size = 0x4, scoped, tag = 'scoped memory for tpu_custom_call.1']
    #allocation10 [shape = 'u8[4096]{0}', space=vmem, size = 0x1000, scoped, tag = 'output window, operand 0, single buffered']
    %9 = vsyncpa [#allocation3], 0
    %10 = vsyncpa [#allocation6], 0
    %11 = vsyncpa [#allocation9], 0
    %12 = vsyncpa [#allocation4], 0
    // Predicated region
    $region2: #{tpu_custom_call.1} parent=1 // pred_check
      _
    $region3: #{tpu_custom_call.1} parent=1 // pred_check_branch
      %14 = sbr.rel (0) target = $region5
    $region4: #{tpu_custom_call.1} parent=1 // pred_region
      %s16 = ssub.s32 128, 128
      %17 = vsyncadd [#allocation3], %s16
      %s19 = sshll.u32 [#allocation2], 4
      %s20 = int_to_ptr.vmem [resolvable:$true] %s19
      %22 = dma.hbm_to_vmem [thread:$0]  %s0, 128, %s20, [#allocation3]
    $region5: #{tpu_custom_call.1} parent=1 // pred_fallthru
      _
    // Predicated region
    $region6: #{tpu_custom_call.1} parent=1 // pred_check
      _
    $region7: #{tpu_custom_call.1} parent=1 // pred_check_branch
      %24 = sbr.rel (0) target = $region9
    $region8: #{tpu_custom_call.1} parent=1 // pred_region
      %s26 = ssub.s32 640, 640
      %27 = vsyncadd [#allocation6], %s26
      %s28 = sshll.u32 [#allocation5], 4
      %s29 = int_to_ptr.vmem [resolvable:$true] %s28
      %34 = dma.hbm_to_vmem [thread:$0]  %s1, 640, %s29, [#allocation6], 128, 128, 8
    $region9: #{tpu_custom_call.1} parent=1 // pred_fallthru
      _
    // Predicated region
    $region10: #{tpu_custom_call.1} parent=1 // pred_check
      _
    $region11: #{tpu_custom_call.1} parent=1 // pred_check_branch
      %36 = sbr.rel (0) target = $region13
    $region12: #{tpu_custom_call.1} parent=1 // pred_region
      %s38 = ssub.s32 10240, 10240
      %39 = vsyncadd [#allocation6], %s38
      %s40 = sshll.u32 [#allocation7], 4
      %s41 = int_to_ptr.vmem [resolvable:$true] %s40
      %46 = dma.hbm_to_vmem [thread:$0]  %s2, 10240, %s41, [#allocation6], 128, 128, 8
    $region13: #{tpu_custom_call.1} parent=1 // pred_fallthru
      _
    // Predicated region
    $region14: #{tpu_custom_call.1} parent=1 // pred_check
      _
    $region15: #{tpu_custom_call.1} parent=1 // pred_check_branch
      %48 = sbr.rel (0) target = $region17
    $region16: #{tpu_custom_call.1} parent=1 // pred_region
      %s50 = ssub.s32 128, 128
      %51 = vsyncadd [#allocation9], %s50
      %s53 = sshll.u32 [#allocation8], 4
      %s54 = int_to_ptr.vmem [resolvable:$true] %s53
      %56 = dma.hbm_to_vmem [thread:$0]  %s3, 128, %s54, [#allocation9]
    $region17: #{tpu_custom_call.1} parent=1 // pred_fallthru
      _
    // Predicated region
    $region18: #{tpu_custom_call.1} parent=1 // pred_check
      _
    $region19: #{tpu_custom_call.1} parent=1 // pred_check_branch
      %58 = sbr.rel (0) target = $region21
    $region20: #{tpu_custom_call.1} parent=1 // pred_region
      %59 = dma.done [#allocation3], 128
    $region21: #{tpu_custom_call.1} parent=1 // pred_fallthru
      _
    // Predicated region
    $region22: #{tpu_custom_call.1} parent=1 // pred_check
      _
    $region23: #{tpu_custom_call.1} parent=1 // pred_check_branch
      %61 = sbr.rel (0) target = $region25
    $region24: #{tpu_custom_call.1} parent=1 // pred_region
      %62 = dma.done [#allocation6], 640
    $region25: #{tpu_custom_call.1} parent=1 // pred_fallthru
      _
    // Predicated region
    $region26: #{tpu_custom_call.1} parent=1 // pred_check
      _
    $region27: #{tpu_custom_call.1} parent=1 // pred_check_branch
      %64 = sbr.rel (0) target = $region29
    $region28: #{tpu_custom_call.1} parent=1 // pred_region
      %65 = dma.done [#allocation6], 10240
    $region29: #{tpu_custom_call.1} parent=1 // pred_fallthru
      _
    // Predicated region
    $region30: #{tpu_custom_call.1} parent=1 // pred_check
      _
    $region31: #{tpu_custom_call.1} parent=1 // pred_check_branch
      %67 = sbr.rel (0) target = $region33
    $region32: #{tpu_custom_call.1} parent=1 // pred_region
      %68 = dma.done [#allocation9], 128
    $region33: #{tpu_custom_call.1} parent=1 // pred_fallthru
      _
    %v69 = vld [vmem:[#allocation8] sm:$0x3f]
    %v70 = vld [vmem:[#allocation2] sm:$0xff]
    %v71 = vld [vmem:[#allocation5] sm:$0xff]
    %v72 = vld [vmem:[#allocation5 + $0x8] sm:$0xff]
    %v73 = vld [vmem:[#allocation5 + $0x10] sm:$0xff]
    %v74 = vld [vmem:[#allocation5 + $0x18] sm:$0xff]
    %v75 = vld [vmem:[#allocation5 + $0x20] sm:$0x1]
    %v76 = vlaneseq
    %v77 = vshrl.u32 %v76, 7
    %v78 = vsub.s32 0, %v77
    %v79 = vrot.slane %v69, %v78
    %vm80 = vcmask 269312
    %v82 = vsel %vm80, %v70, 0
    %vm84 = vcmask 1040384
    %v86 = vsel %vm84, %v75, 0
    %88 = vmatprep.subr.mxu0 0.0
    %89 = vmatpush1.msra.mxu0 0.0
    %90 = vmatprep.subr.mxu0 0.0
    %91 = vmatpush1.msra.mxu0 0.0
    %92 = vmatprep.subr.mxu0 0.0
    %93 = vmatpush1.msra.mxu0 0.0
    %94 = vmatprep.subr.mxu0 0.0
    %95 = vmatpush1.msra.mxu0 0.0
    %96 = vmatprep.subr.mxu0 0.0
    %97 = vmatpush1.msra.mxu0 0.0
    %98 = vmatprep.subr.mxu0 0.0
    %99 = vmatpush1.msra.mxu0 0.0
    %100 = vmatprep.subr.mxu0 0.0
    %101 = vmatpush1.msra.mxu0 0.0
    %102 = vmatprep.subr.mxu0 0.0
    %103 = vmatpush1.msra.mxu0 0.0
    %104 = vmatprep.subr.mxu0 0.0
    %105 = vmatpush1.msra.mxu0 0.0
    %106 = vmatprep.subr.mxu0 0.0
    %107 = vmatpush1.msra.mxu0 0.0
    %108 = vmatprep.subr.mxu0 0.0
    %109 = vmatpush1.msra.mxu0 0.0
    %110 = vmatprep.subr.mxu0 0.0
    %111 = vmatpush1.msra.mxu0 %v86
    %112 = vmatprep.subr.mxu0 0.0
    %113 = vmatpush1.msra.mxu0 %v74
    %114 = vmatprep.subr.mxu0 0.0
    %115 = vmatpush1.msra.mxu0 %v73
    %116 = vmatprep.subr.mxu0 0.0
    %117 = vmatpush1.msra.mxu0 %v72
    %118 = vmatprep.subr.mxu0 0.0
    %119 = vmatpush1.msra.mxu0 %v71
    %120 = vmatprep.subr.mxu0 0.0
    %121 = vmatpush2.msra.mxu0 0.0
    %122 = vmatprep.subr.mxu0 0.0
    %123 = vmatpush2.msra.mxu0 0.0
    %124 = vmatprep.subr.mxu0 0.0
    %125 = vmatpush2.msra.mxu0 0.0
    %126 = vmatprep.subr.mxu0 0.0
    %127 = vmatpush2.msra.mxu0 0.0
    %128 = vmatprep.subr.mxu0 0.0
    %129 = vmatpush2.msra.mxu0 0.0
    %130 = vmatprep.subr.mxu0 0.0
    %131 = vmatpush2.msra.mxu0 0.0
    %132 = vmatprep.subr.mxu0 0.0
    %133 = vmatpush2.msra.mxu0 0.0
    %134 = vmatprep.subr.mxu0 0.0
    %135 = vmatpush2.msra.mxu0 0.0
    %136 = vmatprep.subr.mxu0 0.0
    %137 = vmatpush2.msra.mxu0 0.0
    %138 = vmatprep.subr.mxu0 0.0
    %139 = vmatpush2.msra.mxu0 0.0
    %140 = vmatprep.subr.mxu0 0.0
    %141 = vmatpush2.msra.mxu0 0.0
    %142 = vmatprep.subr.mxu0 0.0
    %143 = vmatpush2.msra.mxu0 0.0
    %144 = vmatprep.subr.mxu0 0.0
    %145 = vmatpush2.msra.mxu0 0.0
    %146 = vmatprep.subr.mxu0 0.0
    %147 = vmatpush2.msra.mxu0 0.0
    %148 = vmatprep.subr.mxu0 0.0
    %149 = vmatpush2.msra.mxu0 0.0
    %150 = vmatprep.subr.mxu0 0.0
    %151 = vmatpush2.msra.mxu0 0.0
    %152 = vmatprep.mubr.f32.mxu0 0.0
    %153 = vmatmul.mubr.f32.gmra.mxu0 %v82
    %v154 = vpop.f32.mrf.mxu0
    %v155 = vadd.f32 %v79, %v154
    %v156 = vpop.f32.mrf.mxu0
    %157 = vdwg.mxu0
    %vm158 = vcmp.gt.f32.partialorder %v155, 0.0
    %v159 = vmul.f32 %v155, 0.01
    %v160 = vsel %vm158, %v155, %v159
    %v161 = vld [vmem:[#allocation7] sm:$0xff]
    %v162 = vld [vmem:[#allocation7 + $0x8] sm:$0xff]
    %v163 = vld [vmem:[#allocation7 + $0x10] sm:$0xff]
    %v164 = vld [vmem:[#allocation7 + $0x18] sm:$0xff]
    %v165 = vld [vmem:[#allocation7 + $0x20] sm:$0xff]
    %v166 = vld [vmem:[#allocation7 + $0x28] sm:$0xff]
    %v167 = vld [vmem:[#allocation7 + $0x30] sm:$0xff]
    %v168 = vld [vmem:[#allocation7 + $0x38] sm:$0xff]
    %v169 = vld [vmem:[#allocation7 + $0x40] sm:$0xff]
    %v170 = vld [vmem:[#allocation7 + $0x48] sm:$0xff]
    %v171 = vld [vmem:[#allocation7 + $0x50] sm:$0xff]
    %v172 = vld [vmem:[#allocation7 + $0x58] sm:$0xff]
    %v173 = vld [vmem:[#allocation7 + $0x60] sm:$0xff]
    %v174 = vld [vmem:[#allocation7 + $0x68] sm:$0xff]
    %v175 = vld [vmem:[#allocation7 + $0x70] sm:$0xff]
    %v176 = vld [vmem:[#allocation7 + $0x78] sm:$0xff]
    %v177 = vlaneseq
    %v178 = vshrl.u32 %v177, 7
    %v179 = vsub.s32 1, %v178
    %v180 = vrot.slane %v69, %v179
    %181 = vmatprep.subr.mxu0 0.0
    %182 = vmatpush1.msra.mxu0 %v176
    %183 = vmatprep.subr.mxu0 0.0
    %184 = vmatpush1.msra.mxu0 %v175
    %185 = vmatprep.subr.mxu0 0.0
    %186 = vmatpush1.msra.mxu0 %v174
    %187 = vmatprep.subr.mxu0 0.0
    %188 = vmatpush1.msra.mxu0 %v173
    %189 = vmatprep.subr.mxu0 0.0
    %190 = vmatpush1.msra.mxu0 %v172
    %191 = vmatprep.subr.mxu0 0.0
    %192 = vmatpush1.msra.mxu0 %v171
    %193 = vmatprep.subr.mxu0 0.0
    %194 = vmatpush1.msra.mxu0 %v170
    %195 = vmatprep.subr.mxu0 0.0
    %196 = vmatpush1.msra.mxu0 %v169
    %197 = vmatprep.subr.mxu0 0.0
    %198 = vmatpush1.msra.mxu0 %v168
    %199 = vmatprep.subr.mxu0 0.0
    %200 = vmatpush1.msra.mxu0 %v167
    %201 = vmatprep.subr.mxu0 0.0
    %202 = vmatpush1.msra.mxu0 %v166
    %203 = vmatprep.subr.mxu0 0.0
    %204 = vmatpush1.msra.mxu0 %v165
    %205 = vmatprep.subr.mxu0 0.0
    %206 = vmatpush1.msra.mxu0 %v164
    %207 = vmatprep.subr.mxu0 0.0
    %208 = vmatpush1.msra.mxu0 %v163
    %209 = vmatprep.subr.mxu0 0.0
    %210 = vmatpush1.msra.mxu0 %v162
    %211 = vmatprep.subr.mxu0 0.0
    %212 = vmatpush1.msra.mxu0 %v161
    %213 = vmatprep.subr.mxu0 0.0
    %214 = vmatpush2.msra.mxu0 0.0
    %215 = vmatprep.subr.mxu0 0.0
    %216 = vmatpush2.msra.mxu0 0.0
    %217 = vmatprep.subr.mxu0 0.0
    %218 = vmatpush2.msra.mxu0 0.0
    %219 = vmatprep.subr.mxu0 0.0
    %220 = vmatpush2.msra.mxu0 0.0
    %221 = vmatprep.subr.mxu0 0.0
    %222 = vmatpush2.msra.mxu0 0.0
    %223 = vmatprep.subr.mxu0 0.0
    %224 = vmatpush2.msra.mxu0 0.0
    %225 = vmatprep.subr.mxu0 0.0
    %226 = vmatpush2.msra.mxu0 0.0
    %227 = vmatprep.subr.mxu0 0.0
    %228 = vmatpush2.msra.mxu0 0.0
    %229 = vmatprep.subr.mxu0 0.0
    %230 = vmatpush2.msra.mxu0 0.0
    %231 = vmatprep.subr.mxu0 0.0
    %232 = vmatpush2.msra.mxu0 0.0
    %233 = vmatprep.subr.mxu0 0.0
    %234 = vmatpush2.msra.mxu0 0.0
    %235 = vmatprep.subr.mxu0 0.0
    %236 = vmatpush2.msra.mxu0 0.0
    %237 = vmatprep.subr.mxu0 0.0
    %238 = vmatpush2.msra.mxu0 0.0
    %239 = vmatprep.subr.mxu0 0.0
    %240 = vmatpush2.msra.mxu0 0.0
    %241 = vmatprep.subr.mxu0 0.0
    %242 = vmatpush2.msra.mxu0 0.0
    %243 = vmatprep.subr.mxu0 0.0
    %244 = vmatpush2.msra.mxu0 0.0
    %245 = vmatprep.mubr.f32.mxu0 0.0
    %246 = vmatmul.mubr.f32.gmra.mxu0 %v160
    %v247 = vpop.f32.mrf.mxu0
    %v248 = vadd.f32 %v180, %v247
    %v249 = vpop.f32.mrf.mxu0
    %250 = vdwg.mxu0
    %vm251 = vcmp.gt.f32.partialorder %v248, 0.0
    %v252 = vmul.f32 %v248, 0.01
    %v253 = vsel %vm251, %v248, %v252
    %s254 = scalar_lea.vmem [#allocation7], 128
    %v255 = vld [vmem:[%s254] sm:$0xff]
    %v256 = vld [vmem:[%s254 + $0x8] sm:$0xff]
    %v257 = vld [vmem:[%s254 + $0x10] sm:$0xff]
    %v258 = vld [vmem:[%s254 + $0x18] sm:$0xff]
    %v259 = vld [vmem:[%s254 + $0x20] sm:$0xff]
    %v260 = vld [vmem:[%s254 + $0x28] sm:$0xff]
    %v261 = vld [vmem:[%s254 + $0x30] sm:$0xff]
    %v262 = vld [vmem:[%s254 + $0x38] sm:$0xff]
    %v263 = vld [vmem:[%s254 + $0x40] sm:$0xff]
    %v264 = vld [vmem:[%s254 + $0x48] sm:$0xff]
    %v265 = vld [vmem:[%s254 + $0x50] sm:$0xff]
    %v266 = vld [vmem:[%s254 + $0x58] sm:$0xff]
    %v267 = vld [vmem:[%s254 + $0x60] sm:$0xff]
    %v268 = vld [vmem:[%s254 + $0x68] sm:$0xff]
    %v269 = vld [vmem:[%s254 + $0x70] sm:$0xff]
    %v270 = vld [vmem:[%s254 + $0x78] sm:$0xff]
    %v271 = vlaneseq
    %v272 = vshrl.u32 %v271, 7
    %v273 = vsub.s32 2, %v272
    %v274 = vrot.slane %v69, %v273
    %275 = vmatprep.subr.mxu0 0.0
    %276 = vmatpush1.msra.mxu0 %v270
    %277 = vmatprep.subr.mxu0 0.0
    %278 = vmatpush1.msra.mxu0 %v269
    %279 = vmatprep.subr.mxu0 0.0
    %280 = vmatpush1.msra.mxu0 %v268
    %281 = vmatprep.subr.mxu0 0.0
    %282 = vmatpush1.msra.mxu0 %v267
    %283 = vmatprep.subr.mxu0 0.0
    %284 = vmatpush1.msra.mxu0 %v266
    %285 = vmatprep.subr.mxu0 0.0
    %286 = vmatpush1.msra.mxu0 %v265
    %287 = vmatprep.subr.mxu0 0.0
    %288 = vmatpush1.msra.mxu0 %v264
    %289 = vmatprep.subr.mxu0 0.0
    %290 = vmatpush1.msra.mxu0 %v263
    %291 = vmatprep.subr.mxu0 0.0
    %292 = vmatpush1.msra.mxu0 %v262
    %293 = vmatprep.subr.mxu0 0.0
    %294 = vmatpush1.msra.mxu0 %v261
    %295 = vmatprep.subr.mxu0 0.0
    %296 = vmatpush1.msra.mxu0 %v260
    %297 = vmatprep.subr.mxu0 0.0
    %298 = vmatpush1.msra.mxu0 %v259
    %299 = vmatprep.subr.mxu0 0.0
    %300 = vmatpush1.msra.mxu0 %v258
    %301 = vmatprep.subr.mxu0 0.0
    %302 = vmatpush1.msra.mxu0 %v257
    %303 = vmatprep.subr.mxu0 0.0
    %304 = vmatpush1.msra.mxu0 %v256
    %305 = vmatprep.subr.mxu0 0.0
    %306 = vmatpush1.msra.mxu0 %v255
    %307 = vmatprep.subr.mxu0 0.0
    %308 = vmatpush2.msra.mxu0 0.0
    %309 = vmatprep.subr.mxu0 0.0
    %310 = vmatpush2.msra.mxu0 0.0
    %311 = vmatprep.subr.mxu0 0.0
    %312 = vmatpush2.msra.mxu0 0.0
    %313 = vmatprep.subr.mxu0 0.0
    %314 = vmatpush2.msra.mxu0 0.0
    %315 = vmatprep.subr.mxu0 0.0
    %316 = vmatpush2.msra.mxu0 0.0
    %317 = vmatprep.subr.mxu0 0.0
    %318 = vmatpush2.msra.mxu0 0.0
    %319 = vmatprep.subr.mxu0 0.0
    %320 = vmatpush2.msra.mxu0 0.0
    %321 = vmatprep.subr.mxu0 0.0
    %322 = vmatpush2.msra.mxu0 0.0
    %323 = vmatprep.subr.mxu0 0.0
    %324 = vmatpush2.msra.mxu0 0.0
    %325 = vmatprep.subr.mxu0 0.0
    %326 = vmatpush2.msra.mxu0 0.0
    %327 = vmatprep.subr.mxu0 0.0
    %328 = vmatpush2.msra.mxu0 0.0
    %329 = vmatprep.subr.mxu0 0.0
    %330 = vmatpush2.msra.mxu0 0.0
    %331 = vmatprep.subr.mxu0 0.0
    %332 = vmatpush2.msra.mxu0 0.0
    %333 = vmatprep.subr.mxu0 0.0
    %334 = vmatpush2.msra.mxu0 0.0
    %335 = vmatprep.subr.mxu0 0.0
    %336 = vmatpush2.msra.mxu0 0.0
    %337 = vmatprep.subr.mxu0 0.0
    %338 = vmatpush2.msra.mxu0 0.0
    %339 = vmatprep.mubr.f32.mxu0 0.0
    %340 = vmatmul.mubr.f32.gmra.mxu0 %v253
    %v341 = vpop.f32.mrf.mxu0
    %v342 = vadd.f32 %v274, %v341
    %v343 = vpop.f32.mrf.mxu0
    %344 = vdwg.mxu0
    %346 = vset.pattern.permute.xlu0 69
    %347 = vperm.xlu0 %346, %v342
    %v348 = vpop.permute.xlu0 %347
    %v350 = vadd.f32 %v348, %v342
    %351 = vrot.lane.b32.xlu0 %v342, 64
    %v352 = vpop.permute.xlu0 %351
    %vm354 = vcmask 39936
    %v355 = vsel %vm354, %v352, 0.0
    %356 = vadd.xlane.f32.xlu0 %v355
    %v357 = vpop.xlane.xlu0 %356
    %v358 = vmul.f32 %v357, 0.2
    %v359 = vsub.f32 %v350, %v358
    %vm360 = vcmp.gt.f32.partialorder %v342, 0.0
    %v361 = vmul.f32 %v342, 0.01
    %v362 = vsel %vm360, %v342, %v361
    %s363 = scalar_lea.vmem [#allocation7], 256
    %v364 = vld [vmem:[%s363] sm:$0xff]
    %v365 = vld [vmem:[%s363 + $0x8] sm:$0xff]
    %v366 = vld [vmem:[%s363 + $0x10] sm:$0xff]
    %v367 = vld [vmem:[%s363 + $0x18] sm:$0xff]
    %v368 = vld [vmem:[%s363 + $0x20] sm:$0xff]
    %v369 = vld [vmem:[%s363 + $0x28] sm:$0xff]
    %v370 = vld [vmem:[%s363 + $0x30] sm:$0xff]
    %v371 = vld [vmem:[%s363 + $0x38] sm:$0xff]
    %v372 = vld [vmem:[%s363 + $0x40] sm:$0xff]
    %v373 = vld [vmem:[%s363 + $0x48] sm:$0xff]
    %v374 = vld [vmem:[%s363 + $0x50] sm:$0xff]
    %v375 = vld [vmem:[%s363 + $0x58] sm:$0xff]
    %v376 = vld [vmem:[%s363 + $0x60] sm:$0xff]
    %v377 = vld [vmem:[%s363 + $0x68] sm:$0xff]
    %v378 = vld [vmem:[%s363 + $0x70] sm:$0xff]
    %v379 = vld [vmem:[%s363 + $0x78] sm:$0xff]
    %v380 = vlaneseq
    %v381 = vshrl.u32 %v380, 7
    %v382 = vsub.s32 3, %v381
    %v383 = vrot.slane %v69, %v382
    %384 = vmatprep.subr.mxu0 0.0
    %385 = vmatpush1.msra.mxu0 %v379
    %386 = vmatprep.subr.mxu0 0.0
    %387 = vmatpush1.msra.mxu0 %v378
    %388 = vmatprep.subr.mxu0 0.0
    %389 = vmatpush1.msra.mxu0 %v377
    %390 = vmatprep.subr.mxu0 0.0
    %391 = vmatpush1.msra.mxu0 %v376
    %392 = vmatprep.subr.mxu0 0.0
    %393 = vmatpush1.msra.mxu0 %v375
    %394 = vmatprep.subr.mxu0 0.0
    %395 = vmatpush1.msra.mxu0 %v374
    %396 = vmatprep.subr.mxu0 0.0
    %397 = vmatpush1.msra.mxu0 %v373
    %398 = vmatprep.subr.mxu0 0.0
    %399 = vmatpush1.msra.mxu0 %v372
    %400 = vmatprep.subr.mxu0 0.0
    %401 = vmatpush1.msra.mxu0 %v371
    %402 = vmatprep.subr.mxu0 0.0
    %403 = vmatpush1.msra.mxu0 %v370
    %404 = vmatprep.subr.mxu0 0.0
    %405 = vmatpush1.msra.mxu0 %v369
    %406 = vmatprep.subr.mxu0 0.0
    %407 = vmatpush1.msra.mxu0 %v368
    %408 = vmatprep.subr.mxu0 0.0
    %409 = vmatpush1.msra.mxu0 %v367
    %410 = vmatprep.subr.mxu0 0.0
    %411 = vmatpush1.msra.mxu0 %v366
    %412 = vmatprep.subr.mxu0 0.0
    %413 = vmatpush1.msra.mxu0 %v365
    %414 = vmatprep.subr.mxu0 0.0
    %415 = vmatpush1.msra.mxu0 %v364
    %416 = vmatprep.subr.mxu0 0.0
    %417 = vmatpush2.msra.mxu0 0.0
    %418 = vmatprep.subr.mxu0 0.0
    %419 = vmatpush2.msra.mxu0 0.0
    %420 = vmatprep.subr.mxu0 0.0
    %421 = vmatpush2.msra.mxu0 0.0
    %422 = vmatprep.subr.mxu0 0.0
    %423 = vmatpush2.msra.mxu0 0.0
    %424 = vmatprep.subr.mxu0 0.0
    %425 = vmatpush2.msra.mxu0 0.0
    %426 = vmatprep.subr.mxu0 0.0
    %427 = vmatpush2.msra.mxu0 0.0
    %428 = vmatprep.subr.mxu0 0.0
    %429 = vmatpush2.msra.mxu0 0.0
    %430 = vmatprep.subr.mxu0 0.0
    %431 = vmatpush2.msra.mxu0 0.0
    %432 = vmatprep.subr.mxu0 0.0
    %433 = vmatpush2.msra.mxu0 0.0
    %434 = vmatprep.subr.mxu0 0.0
    %435 = vmatpush2.msra.mxu0 0.0
    %436 = vmatprep.subr.mxu0 0.0
    %437 = vmatpush2.msra.mxu0 0.0
    %438 = vmatprep.subr.mxu0 0.0
    %439 = vmatpush2.msra.mxu0 0.0
    %440 = vmatprep.subr.mxu0 0.0
    %441 = vmatpush2.msra.mxu0 0.0
    %442 = vmatprep.subr.mxu0 0.0
    %443 = vmatpush2.msra.mxu0 0.0
    %444 = vmatprep.subr.mxu0 0.0
    %445 = vmatpush2.msra.mxu0 0.0
    %446 = vmatprep.subr.mxu0 0.0
    %447 = vmatpush2.msra.mxu0 0.0
    %448 = vmatprep.mubr.f32.mxu0 0.0
    %449 = vmatmul.mubr.f32.gmra.mxu0 %v362
    %v450 = vpop.f32.mrf.mxu0
    %v451 = vadd.f32 %v383, %v450
    %v452 = vpop.f32.mrf.mxu0
    %453 = vdwg.mxu0
    %vm454 = vcmp.gt.f32.partialorder %v451, 0.0
    %v455 = vmul.f32 %v451, 0.01
    %v456 = vsel %vm454, %v451, %v455
    %s457 = scalar_lea.vmem [#allocation7], 384
    %v458 = vld [vmem:[%s457] sm:$0xff]
    %v459 = vld [vmem:[%s457 + $0x8] sm:$0xff]
    %v460 = vld [vmem:[%s457 + $0x10] sm:$0xff]
    %v461 = vld [vmem:[%s457 + $0x18] sm:$0xff]
    %v462 = vld [vmem:[%s457 + $0x20] sm:$0xff]
    %v463 = vld [vmem:[%s457 + $0x28] sm:$0xff]
    %v464 = vld [vmem:[%s457 + $0x30] sm:$0xff]
    %v465 = vld [vmem:[%s457 + $0x38] sm:$0xff]
    %v466 = vld [vmem:[%s457 + $0x40] sm:$0xff]
    %v467 = vld [vmem:[%s457 + $0x48] sm:$0xff]
    %v468 = vld [vmem:[%s457 + $0x50] sm:$0xff]
    %v469 = vld [vmem:[%s457 + $0x58] sm:$0xff]
    %v470 = vld [vmem:[%s457 + $0x60] sm:$0xff]
    %v471 = vld [vmem:[%s457 + $0x68] sm:$0xff]
    %v472 = vld [vmem:[%s457 + $0x70] sm:$0xff]
    %v473 = vld [vmem:[%s457 + $0x78] sm:$0xff]
    %v474 = vlaneseq
    %v475 = vshrl.u32 %v474, 7
    %v476 = vsub.s32 4, %v475
    %v477 = vrot.slane %v69, %v476
    %478 = vmatprep.subr.mxu0 0.0
    %479 = vmatpush1.msra.mxu0 %v473
    %480 = vmatprep.subr.mxu0 0.0
    %481 = vmatpush1.msra.mxu0 %v472
    %482 = vmatprep.subr.mxu0 0.0
    %483 = vmatpush1.msra.mxu0 %v471
    %484 = vmatprep.subr.mxu0 0.0
    %485 = vmatpush1.msra.mxu0 %v470
    %486 = vmatprep.subr.mxu0 0.0
    %487 = vmatpush1.msra.mxu0 %v469
    %488 = vmatprep.subr.mxu0 0.0
    %489 = vmatpush1.msra.mxu0 %v468
    %490 = vmatprep.subr.mxu0 0.0
    %491 = vmatpush1.msra.mxu0 %v467
    %492 = vmatprep.subr.mxu0 0.0
    %493 = vmatpush1.msra.mxu0 %v466
    %494 = vmatprep.subr.mxu0 0.0
    %495 = vmatpush1.msra.mxu0 %v465
    %496 = vmatprep.subr.mxu0 0.0
    %497 = vmatpush1.msra.mxu0 %v464
    %498 = vmatprep.subr.mxu0 0.0
    %499 = vmatpush1.msra.mxu0 %v463
    %500 = vmatprep.subr.mxu0 0.0
    %501 = vmatpush1.msra.mxu0 %v462
    %502 = vmatprep.subr.mxu0 0.0
    %503 = vmatpush1.msra.mxu0 %v461
    %504 = vmatprep.subr.mxu0 0.0
    %505 = vmatpush1.msra.mxu0 %v460
    %506 = vmatprep.subr.mxu0 0.0
    %507 = vmatpush1.msra.mxu0 %v459
    %508 = vmatprep.subr.mxu0 0.0
    %509 = vmatpush1.msra.mxu0 %v458
    %510 = vmatprep.subr.mxu0 0.0
    %511 = vmatpush2.msra.mxu0 0.0
    %512 = vmatprep.subr.mxu0 0.0
    %513 = vmatpush2.msra.mxu0 0.0
    %514 = vmatprep.subr.mxu0 0.0
    %515 = vmatpush2.msra.mxu0 0.0
    %516 = vmatprep.subr.mxu0 0.0
    %517 = vmatpush2.msra.mxu0 0.0
    %518 = vmatprep.subr.mxu0 0.0
    %519 = vmatpush2.msra.mxu0 0.0
    %520 = vmatprep.subr.mxu0 0.0
    %521 = vmatpush2.msra.mxu0 0.0
    %522 = vmatprep.subr.mxu0 0.0
    %523 = vmatpush2.msra.mxu0 0.0
    %524 = vmatprep.subr.mxu0 0.0
    %525 = vmatpush2.msra.mxu0 0.0
    %526 = vmatprep.subr.mxu0 0.0
    %527 = vmatpush2.msra.mxu0 0.0
    %528 = vmatprep.subr.mxu0 0.0
    %529 = vmatpush2.msra.mxu0 0.0
    %530 = vmatprep.subr.mxu0 0.0
    %531 = vmatpush2.msra.mxu0 0.0
    %532 = vmatprep.subr.mxu0 0.0
    %533 = vmatpush2.msra.mxu0 0.0
    %534 = vmatprep.subr.mxu0 0.0
    %535 = vmatpush2.msra.mxu0 0.0
    %536 = vmatprep.subr.mxu0 0.0
    %537 = vmatpush2.msra.mxu0 0.0
    %538 = vmatprep.subr.mxu0 0.0
    %539 = vmatpush2.msra.mxu0 0.0
    %540 = vmatprep.subr.mxu0 0.0
    %541 = vmatpush2.msra.mxu0 0.0
    %542 = vmatprep.mubr.f32.mxu0 0.0
    %543 = vmatmul.mubr.f32.gmra.mxu0 %v456
    %v544 = vpop.f32.mrf.mxu0
    %v545 = vadd.f32 %v477, %v544
    %v546 = vpop.f32.mrf.mxu0
    %547 = vdwg.mxu0
    %vm548 = vcmp.gt.f32.partialorder %v545, 0.0
    %v549 = vmul.f32 %v545, 0.01
    %v550 = vsel %vm548, %v545, %v549
    %s551 = scalar_lea.vmem [#allocation7], 512
    %v552 = vld [vmem:[%s551] sm:$0xff]
    %v553 = vld [vmem:[%s551 + $0x8] sm:$0xff]
    %v554 = vld [vmem:[%s551 + $0x10] sm:$0xff]
    %v555 = vld [vmem:[%s551 + $0x18] sm:$0xff]
    %v556 = vld [vmem:[%s551 + $0x20] sm:$0xff]
    %v557 = vld [vmem:[%s551 + $0x28] sm:$0xff]
    %v558 = vld [vmem:[%s551 + $0x30] sm:$0xff]
    %v559 = vld [vmem:[%s551 + $0x38] sm:$0xff]
    %v560 = vld [vmem:[%s551 + $0x40] sm:$0xff]
    %v561 = vld [vmem:[%s551 + $0x48] sm:$0xff]
    %v562 = vld [vmem:[%s551 + $0x50] sm:$0xff]
    %v563 = vld [vmem:[%s551 + $0x58] sm:$0xff]
    %v564 = vld [vmem:[%s551 + $0x60] sm:$0xff]
    %v565 = vld [vmem:[%s551 + $0x68] sm:$0xff]
    %v566 = vld [vmem:[%s551 + $0x70] sm:$0xff]
    %v567 = vld [vmem:[%s551 + $0x78] sm:$0xff]
    %v568 = vlaneseq
    %v569 = vshrl.u32 %v568, 7
    %v570 = vsub.s32 5, %v569
    %v571 = vrot.slane %v69, %v570
    %572 = vmatprep.subr.mxu0 0.0
    %573 = vmatpush1.msra.mxu0 %v567
    %574 = vmatprep.subr.mxu0 0.0
    %575 = vmatpush1.msra.mxu0 %v566
    %576 = vmatprep.subr.mxu0 0.0
    %577 = vmatpush1.msra.mxu0 %v565
    %578 = vmatprep.subr.mxu0 0.0
    %579 = vmatpush1.msra.mxu0 %v564
    %580 = vmatprep.subr.mxu0 0.0
    %581 = vmatpush1.msra.mxu0 %v563
    %582 = vmatprep.subr.mxu0 0.0
    %583 = vmatpush1.msra.mxu0 %v562
    %584 = vmatprep.subr.mxu0 0.0
    %585 = vmatpush1.msra.mxu0 %v561
    %586 = vmatprep.subr.mxu0 0.0
    %587 = vmatpush1.msra.mxu0 %v560
    %588 = vmatprep.subr.mxu0 0.0
    %589 = vmatpush1.msra.mxu0 %v559
    %590 = vmatprep.subr.mxu0 0.0
    %591 = vmatpush1.msra.mxu0 %v558
    %592 = vmatprep.subr.mxu0 0.0
    %593 = vmatpush1.msra.mxu0 %v557
    %594 = vmatprep.subr.mxu0 0.0
    %595 = vmatpush1.msra.mxu0 %v556
    %596 = vmatprep.subr.mxu0 0.0
    %597 = vmatpush1.msra.mxu0 %v555
    %598 = vmatprep.subr.mxu0 0.0
    %599 = vmatpush1.msra.mxu0 %v554
    %600 = vmatprep.subr.mxu0 0.0
    %601 = vmatpush1.msra.mxu0 %v553
    %602 = vmatprep.subr.mxu0 0.0
    %603 = vmatpush1.msra.mxu0 %v552
    %604 = vmatprep.subr.mxu0 0.0
    %605 = vmatpush2.msra.mxu0 0.0
    %606 = vmatprep.subr.mxu0 0.0
    %607 = vmatpush2.msra.mxu0 0.0
    %608 = vmatprep.subr.mxu0 0.0
    %609 = vmatpush2.msra.mxu0 0.0
    %610 = vmatprep.subr.mxu0 0.0
    %611 = vmatpush2.msra.mxu0 0.0
    %612 = vmatprep.subr.mxu0 0.0
    %613 = vmatpush2.msra.mxu0 0.0
    %614 = vmatprep.subr.mxu0 0.0
    %615 = vmatpush2.msra.mxu0 0.0
    %616 = vmatprep.subr.mxu0 0.0
    %617 = vmatpush2.msra.mxu0 0.0
    %618 = vmatprep.subr.mxu0 0.0
    %619 = vmatpush2.msra.mxu0 0.0
    %620 = vmatprep.subr.mxu0 0.0
    %621 = vmatpush2.msra.mxu0 0.0
    %622 = vmatprep.subr.mxu0 0.0
    %623 = vmatpush2.msra.mxu0 0.0
    %624 = vmatprep.subr.mxu0 0.0
    %625 = vmatpush2.msra.mxu0 0.0
    %626 = vmatprep.subr.mxu0 0.0
    %627 = vmatpush2.msra.mxu0 0.0
    %628 = vmatprep.subr.mxu0 0.0
    %629 = vmatpush2.msra.mxu0 0.0
    %630 = vmatprep.subr.mxu0 0.0
    %631 = vmatpush2.msra.mxu0 0.0
    %632 = vmatprep.subr.mxu0 0.0
    %633 = vmatpush2.msra.mxu0 0.0
    %634 = vmatprep.subr.mxu0 0.0
    %635 = vmatpush2.msra.mxu0 0.0
    %636 = vmatprep.mubr.f32.mxu0 0.0
    %637 = vmatmul.mubr.f32.gmra.mxu0 %v550
    %v638 = vpop.f32.mrf.mxu0
    %v639 = vadd.f32 %v571, %v638
    %v640 = vpop.f32.mrf.mxu0
    %641 = vdwg.mxu0
    %643 = vset.pattern.permute.xlu0 4
    %644 = vperm.xlu0 %643, %v639
    %v645 = vpop.permute.xlu0 %644
    %v647 = vadd.f32 %v645, %v639
    %vm648 = vcmask 31744
    %v649 = vsel %vm648, %v639, 0.0
    %650 = vadd.xlane.f32.xlu0 %v649
    %v651 = vpop.xlane.xlu0 %650
    %v652 = vmul.f32 %v651, 0.25
    %v653 = vsub.f32 %v647, %v652
    %655 = vrot.lane.b32.xlu0 %v359, 64
    %v656 = vpop.permute.xlu0 %655
    %659 = vrot.lane.b32.xlu0 %v653, 5
    %v660 = vpop.permute.xlu0 %659
    %v662 = vsel %vm354, %v656, %v660
    %vm663 = vcmask 72704
    %v664 = vsel %vm663, %v662, 0.0
    %665 = vst [vmem:[#allocation10] sm:$0xff] %v664
    // Predicated region
    $region34: #{tpu_custom_call.1} parent=1 // pred_check
      _
    $region35: #{tpu_custom_call.1} parent=1 // pred_check_branch
      %667 = sbr.rel (0) target = $region37
    $region36: #{tpu_custom_call.1} parent=1 // pred_region
      %s669 = ssub.s32 128, 128
      %670 = vsyncadd [#allocation4], %s669
      %s672 = sshll.u32 [#allocation10], 4
      %s673 = int_to_ptr.vmem [resolvable:$true] %s672
      %675 = dma.vmem_to_hbm [thread:$0]  %s673, 128, %s4, [#allocation4]
    $region37: #{tpu_custom_call.1} parent=1 // pred_fallthru
      _
    // Predicated region
    $region38: #{tpu_custom_call.1} parent=1 // pred_check
      _
    $region39: #{tpu_custom_call.1} parent=1 // pred_check_branch
      %677 = sbr.rel (0) target = $region41
    $region40: #{tpu_custom_call.1} parent=1 // pred_region
      %678 = dma.done [#allocation4], 128
    $region41: #{tpu_custom_call.1} parent=1 // pred_fallthru
      _
    %679 = vsyncpa [#allocation3], 1
    %680 = vsyncpa [#allocation6], 1
    %681 = vsyncpa [#allocation9], 1
    %682 = vsyncpa [#allocation4], 1

</llo_original>
